<compile_context>
chip_gen: v7x
topology: tpu7x:2x2x1
jax: 0.10.0
libtpu: 0.0.40
codegen_flags: <defaults>
</compile_context>

<pallas_src>
import jax
import jax.numpy as jnp
from jax.experimental import pallas as pl
from jax.experimental.pallas import tpu as pltpu


def _dempster_kernel(m_ref, o_ref):
    """m_ref block: [Bt, C, K, Nt]  ->  o_ref block: [Bt, C, Nt] (float32)."""
    Bt, C, K, Nt = m_ref.shape

    # omega / ignorance channel, kept resident in f32: [Bt, K, Nt]
    om = m_ref[:, C - 1, :, :].astype(jnp.float32)
    # log(relu(omega) + 1e-10) summed over the K fused mass functions.
    tmp_om = jnp.sum(jnp.log(jnp.maximum(om, 0.0) + 1e-10), axis=1)   # [Bt, Nt]

    # Per-class log-sums via a static channel loop: peak VMEM stays at ~2
    # K-slabs (omega + current class) instead of a full f32 copy of the block
    # plus (cls + omega) copies — this is what lets Bt/Nt be large.
    tmp_cls = []
    for c in range(C - 1):
        cls_c = m_ref[:, c, :, :].astype(jnp.float32)                 # [Bt,K,Nt]
        v = jnp.maximum(cls_c + om, 0.0) + 1e-10
        tmp_cls.append(jnp.sum(jnp.log(v), axis=1))                   # [Bt, Nt]

    # Numerical stabilization: subtract the per-location max over all C rows.
    max_all = tmp_om
    for t in tmp_cls:
        max_all = jnp.maximum(max_all, t)

    m1_om = jnp.exp(tmp_om - max_all)                                 # [Bt, Nt]
    m1_cls = [jnp.exp(t - max_all) - m1_om for t in tmp_cls]

    # L1 normalization over the class axis (torch.nn.functional.normalize,
    # p=1, eps=1e-12).  abs() kept so possibly-negative (non-mass) inputs
    # match the PyTorch reference; m1_om = exp(.) >= 0 needs no abs.
    norm = m1_om
    for v in m1_cls:
        norm = norm + jnp.abs(v)
    norm = jnp.maximum(norm, 1e-12)
    inv = pl.reciprocal(norm, approx=True)      # EUP slot (otherwise idle)
    inv = inv * (2.0 - norm * inv)              # one Newton step -> full f32

    # Per-channel stores: output traffic is 1/K of input, so these small
    # sublane-offset stores are negligible and no concatenate is materialized.
    for c in range(C - 1):
        o_ref[:, c, :] = m1_cls[c] * inv
    o_ref[:, C - 1, :] = m1_om * inv


def _choose_tiles(B, C, K, Np, itemsize):
    """Pick (Bt, Nt, vmem_limit_bytes).  Np must be a multiple of 128."""
    # Generation-aware physical VMEM (64 MiB on v7x, 128 MiB on v5e/v6e).
    try:
        vmem_bytes = int(pltpu.get_tpu_info().vmem_capacity_bytes)
    except Exception:
        vmem_bytes = 64 * 1024 * 1024   # conservative (v7x-sized) fallback

    # Input-block budget: leaves room for double-buffered input + output,
    # ~2 f32 K-slab intermediates and headroom.
    block_budget = max(vmem_bytes // 12, 512 * 1024)

    per_b = C * K * Np * itemsize       # input bytes per batch element, full N
    q = Np // 128

    if per_b <= block_budget:
        # Full flattened spatial extent per block (fully contiguous HBM rows);
        # fold batch into the block while it still fits.
        nt = Np
        bt = 1
        for cand in range(B, 0, -1):
            if B % cand == 0 and cand * per_b <= block_budget:
                bt = cand
                break
    else:
        # Tile N: largest multiple-of-128 divisor of Np that fits the budget.
        bt = 1
        nt = 128
        for d in range(q, 0, -1):
            if q % d == 0 and C * K * (128 * d) * itemsize <= block_budget:
                nt = 128 * d
                break

    # Guarantee >= 2 grid programs so both v7x TensorCores get work
    # (costs nothing on single-TC v5e/v6e).
    if (B // bt) * (Np // nt) < 2:
        if q >= 2:
            for d in range(q // 2, 0, -1):
                if q % d == 0:
                    nt = 128 * d
                    break
        elif B >= 2 and bt == B:
            for cand in range(B // 2, 0, -1):
                if B % cand == 0:
                    bt = cand
                    break

    # VMEM limit derived from the chosen blocks (double-buffered in/out +
    # f32 intermediates + margin), capped below physical VMEM.
    in_block = bt * C * K * nt * itemsize
    out_block = bt * C * nt * 4
    interm = 2 * bt * K * nt * 4 + (2 * C + 4) * bt * nt * 4
    needed = 2 * in_block + 2 * out_block + interm + (2 << 20)
    vmem_limit = int(min(max(needed, 32 * 1024 * 1024), (vmem_bytes * 3) // 4))
    return bt, nt, vmem_limit


def dempster_layer(m):
    """m: [B, C, K, H, W] float (f32 or bf16) -> [B, C, H, W] float32."""
    B, C, K, H, W = m.shape
    N = H * W
    m_flat = m.reshape(B, C, K, N)

    # Pad the flattened spatial axis to a multiple of 128 so every block is
    # (8,128)-aligned and lane-dense (padding with zeros is numerically safe:
    # clamp to 1e-10 before the log keeps everything finite; padded columns
    # are sliced off below).
    Np = ((N + 127) // 128) * 128
    if Np != N:
        m_flat = jnp.pad(m_flat, ((0, 0), (0, 0), (0, 0), (0, Np - N)))

    Bt, Nt, vmem_limit = _choose_tiles(B, C, K, Np, m_flat.dtype.itemsize)
    grid = (B // Bt, Np // Nt)

    out = pl.pallas_call(
        _dempster_kernel,
        out_shape=jax.ShapeDtypeStruct((B, C, Np), jnp.float32),
        grid_spec=pltpu.PrefetchScalarGridSpec(
            num_scalar_prefetch=0,
            grid=grid,
            in_specs=[pl.BlockSpec((Bt, C, K, Nt), lambda b, n: (b, 0, 0, n))],
            out_specs=pl.BlockSpec((Bt, C, Nt), lambda b, n: (b, 0, n)),
        ),
        compiler_params=pltpu.CompilerParams(
            dimension_semantics=("parallel", "parallel"),
            vmem_limit_bytes=vmem_limit,
        ),
    )(m_flat)

    if Np != N:
        out = out[:, :, :N]
    return out.reshape(B, C, H, W)


def dempster_layer_ref(m):
    """Pure-JAX reference mirroring the PyTorch forward exactly."""
    omega = m[:, -1:, ...]                                   # [B,1,K,H,W]
    m_omega = jnp.concatenate([m[:, :-1] + omega, omega], axis=1)
    tmp = jnp.sum(jnp.log(jnp.maximum(m_omega, 0.0) + 1e-10), axis=2)
    tmp = tmp - jnp.max(tmp, axis=1, keepdims=True)
    m1 = jnp.exp(tmp)
    prod_omega = m1[:, -1:, ...]
    m1 = jnp.concatenate([m1[:, :-1] - prod_omega, prod_omega], axis=1)
    norm = jnp.maximum(jnp.sum(jnp.abs(m1), axis=1, keepdims=True), 1e-12)
    return m1 / norm


if __name__ == "__main__":
    B, C, K, H, W = 2, 4, 8, 16, 16
    key = jax.random.PRNGKey(0)
    # mass-like values in (0, 1), as emitted by plausibility/mass layers
    m = jax.random.uniform(key, (B, C, K, H, W), dtype=jnp.float32,
                           minval=0.05, maxval=1.0)

    out = jax.block_until_ready(dempster_layer(m))
    ref = jax.block_until_ready(dempster_layer_ref(m))

    assert out.shape == (B, C, H, W), out.shape
    assert jnp.allclose(out, ref, atol=1e-4, rtol=1e-4), float(
        jnp.max(jnp.abs(out - ref)))
    print("KERNEL_OK")
</pallas_src>

<mosaic_0001>
module attributes {stable_mosaic.version = 11 : i64} {
  func.func @_dempster_kernel(%arg0: i32, %arg1: i32, %arg2: memref<2x4x8x128xf32, #tpu.memory_space<vmem>>, %arg3: memref<2x4x128xf32, #tpu.memory_space<vmem>>) attributes {dimension_semantics = [#tpu.dimension_semantics<parallel>, #tpu.dimension_semantics<parallel>], iteration_bounds = array<i64: 1, 2>, scalar_prefetch = 0 : i64, scratch_operands = 0 : i64, tpu.core_type = #tpu.core_type<tc>, window_params = [{transform_indices = @transform_0, window_bounds = array<i64: 2, 4, 8, 128>}, {transform_indices = @transform_1, window_bounds = array<i64: 2, 4, 128>}]} {
    %c0 = arith.constant 0 : index
    %c3 = arith.constant 3 : index
    %c0_0 = arith.constant 0 : index
    %c0_1 = arith.constant 0 : index
    %0 = vector.load %arg2[%c0, %c3, %c0_0, %c0_1] : memref<2x4x8x128xf32, #tpu.memory_space<vmem>>, vector<2x1x8x128xf32>
    %1 = vector.shape_cast %0 : vector<2x1x8x128xf32> to vector<2x8x128xf32>
    %cst = arith.constant 0.000000e+00 : f32
    %2 = vector.broadcast %cst : f32 to vector<2x8x128xf32>
    %3 = arith.maximumf %1, %2 : vector<2x8x128xf32>
    %cst_2 = arith.constant 1.000000e-10 : f32
    %4 = vector.broadcast %cst_2 : f32 to vector<2x8x128xf32>
    %5 = arith.addf %3, %4 : vector<2x8x128xf32>
    %6 = math.log %5 : vector<2x8x128xf32>
    %cst_3 = arith.constant dense<0.000000e+00> : vector<2x128xf32>
    %7 = vector.multi_reduction <add>, %6, %cst_3 [1] : vector<2x8x128xf32> to vector<2x128xf32>
    %c0_4 = arith.constant 0 : index
    %c0_5 = arith.constant 0 : index
    %c0_6 = arith.constant 0 : index
    %c0_7 = arith.constant 0 : index
    %8 = vector.load %arg2[%c0_4, %c0_5, %c0_6, %c0_7] : memref<2x4x8x128xf32, #tpu.memory_space<vmem>>, vector<2x1x8x128xf32>
    %9 = vector.shape_cast %8 : vector<2x1x8x128xf32> to vector<2x8x128xf32>
    %10 = arith.addf %9, %1 : vector<2x8x128xf32>
    %cst_8 = arith.constant 0.000000e+00 : f32
    %11 = vector.broadcast %cst_8 : f32 to vector<2x8x128xf32>
    %12 = arith.maximumf %10, %11 : vector<2x8x128xf32>
    %cst_9 = arith.constant 1.000000e-10 : f32
    %13 = vector.broadcast %cst_9 : f32 to vector<2x8x128xf32>
    %14 = arith.addf %12, %13 : vector<2x8x128xf32>
    %15 = math.log %14 : vector<2x8x128xf32>
    %cst_10 = arith.constant dense<0.000000e+00> : vector<2x128xf32>
    %16 = vector.multi_reduction <add>, %15, %cst_10 [1] : vector<2x8x128xf32> to vector<2x128xf32>
    %c0_11 = arith.constant 0 : index
    %c1 = arith.constant 1 : index
    %c0_12 = arith.constant 0 : index
    %c0_13 = arith.constant 0 : index
    %17 = vector.load %arg2[%c0_11, %c1, %c0_12, %c0_13] : memref<2x4x8x128xf32, #tpu.memory_space<vmem>>, vector<2x1x8x128xf32>
    %18 = vector.shape_cast %17 : vector<2x1x8x128xf32> to vector<2x8x128xf32>
    %19 = arith.addf %18, %1 : vector<2x8x128xf32>
    %cst_14 = arith.constant 0.000000e+00 : f32
    %20 = vector.broadcast %cst_14 : f32 to vector<2x8x128xf32>
    %21 = arith.maximumf %19, %20 : vector<2x8x128xf32>
    %cst_15 = arith.constant 1.000000e-10 : f32
    %22 = vector.broadcast %cst_15 : f32 to vector<2x8x128xf32>
    %23 = arith.addf %21, %22 : vector<2x8x128xf32>
    %24 = math.log %23 : vector<2x8x128xf32>
    %cst_16 = arith.constant dense<0.000000e+00> : vector<2x128xf32>
    %25 = vector.multi_reduction <add>, %24, %cst_16 [1] : vector<2x8x128xf32> to vector<2x128xf32>
    %c0_17 = arith.constant 0 : index
    %c2 = arith.constant 2 : index
    %c0_18 = arith.constant 0 : index
    %c0_19 = arith.constant 0 : index
    %26 = vector.load %arg2[%c0_17, %c2, %c0_18, %c0_19] : memref<2x4x8x128xf32, #tpu.memory_space<vmem>>, vector<2x1x8x128xf32>
    %27 = vector.shape_cast %26 : vector<2x1x8x128xf32> to vector<2x8x128xf32>
    %28 = arith.addf %27, %1 : vector<2x8x128xf32>
    %cst_20 = arith.constant 0.000000e+00 : f32
    %29 = vector.broadcast %cst_20 : f32 to vector<2x8x128xf32>
    %30 = arith.maximumf %28, %29 : vector<2x8x128xf32>
    %cst_21 = arith.constant 1.000000e-10 : f32
    %31 = vector.broadcast %cst_21 : f32 to vector<2x8x128xf32>
    %32 = arith.addf %30, %31 : vector<2x8x128xf32>
    %33 = math.log %32 : vector<2x8x128xf32>
    %cst_22 = arith.constant dense<0.000000e+00> : vector<2x128xf32>
    %34 = vector.multi_reduction <add>, %33, %cst_22 [1] : vector<2x8x128xf32> to vector<2x128xf32>
    %35 = arith.maximumf %7, %16 : vector<2x128xf32>
    %36 = arith.maximumf %35, %25 : vector<2x128xf32>
    %37 = arith.maximumf %36, %34 : vector<2x128xf32>
    %38 = arith.subf %7, %37 : vector<2x128xf32>
    %39 = math.exp %38 : vector<2x128xf32>
    %40 = arith.subf %16, %37 : vector<2x128xf32>
    %41 = math.exp %40 : vector<2x128xf32>
    %42 = arith.subf %41, %39 : vector<2x128xf32>
    %43 = arith.subf %25, %37 : vector<2x128xf32>
    %44 = math.exp %43 : vector<2x128xf32>
    %45 = arith.subf %44, %39 : vector<2x128xf32>
    %46 = arith.subf %34, %37 : vector<2x128xf32>
    %47 = math.exp %46 : vector<2x128xf32>
    %48 = arith.subf %47, %39 : vector<2x128xf32>
    %49 = math.absf %42 : vector<2x128xf32>
    %50 = arith.addf %39, %49 : vector<2x128xf32>
    %51 = math.absf %45 : vector<2x128xf32>
    %52 = arith.addf %50, %51 : vector<2x128xf32>
    %53 = math.absf %48 : vector<2x128xf32>
    %54 = arith.addf %52, %53 : vector<2x128xf32>
    %cst_23 = arith.constant 9.99999996E-13 : f32
    %55 = vector.broadcast %cst_23 : f32 to vector<2x128xf32>
    %56 = arith.maximumf %54, %55 : vector<2x128xf32>
    %57 = tpu.reciprocal %56 {approx = true} : vector<2x128xf32> -> vector<2x128xf32>
    %58 = arith.mulf %56, %57 : vector<2x128xf32>
    %cst_24 = arith.constant 2.000000e+00 : f32
    %59 = vector.broadcast %cst_24 : f32 to vector<2x128xf32>
    %60 = arith.subf %59, %58 : vector<2x128xf32>
    %61 = arith.mulf %57, %60 : vector<2x128xf32>
    %62 = arith.mulf %42, %61 : vector<2x128xf32>
    %c0_25 = arith.constant 0 : index
    %c0_26 = arith.constant 0 : index
    %c0_27 = arith.constant 0 : index
    %63 = vector.load %arg3[%c0_25, %c0_26, %c0_27] : memref<2x4x128xf32, #tpu.memory_space<vmem>>, vector<2x1x128xf32>
    %64 = vector.shape_cast %63 : vector<2x1x128xf32> to vector<2x128xf32>
    %65 = vector.shape_cast %62 : vector<2x128xf32> to vector<2x1x128xf32>
    tpu.vector_store %arg3[%c0_25, %c0_26, %c0_27], %65 {strides = array<i32>} : memref<2x4x128xf32, #tpu.memory_space<vmem>>, vector<2x1x128xf32>,
    %66 = arith.mulf %45, %61 : vector<2x128xf32>
    %c0_28 = arith.constant 0 : index
    %c1_29 = arith.constant 1 : index
    %c0_30 = arith.constant 0 : index
    %67 = vector.load %arg3[%c0_28, %c1_29, %c0_30] : memref<2x4x128xf32, #tpu.memory_space<vmem>>, vector<2x1x128xf32>
    %68 = vector.shape_cast %67 : vector<2x1x128xf32> to vector<2x128xf32>
    %69 = vector.shape_cast %66 : vector<2x128xf32> to vector<2x1x128xf32>
    tpu.vector_store %arg3[%c0_28, %c1_29, %c0_30], %69 {strides = array<i32>} : memref<2x4x128xf32, #tpu.memory_space<vmem>>, vector<2x1x128xf32>,
    %70 = arith.mulf %48, %61 : vector<2x128xf32>
    %c0_31 = arith.constant 0 : index
    %c2_32 = arith.constant 2 : index
    %c0_33 = arith.constant 0 : index
    %71 = vector.load %arg3[%c0_31, %c2_32, %c0_33] : memref<2x4x128xf32, #tpu.memory_space<vmem>>, vector<2x1x128xf32>
    %72 = vector.shape_cast %71 : vector<2x1x128xf32> to vector<2x128xf32>
    %73 = vector.shape_cast %70 : vector<2x128xf32> to vector<2x1x128xf32>
    tpu.vector_store %arg3[%c0_31, %c2_32, %c0_33], %73 {strides = array<i32>} : memref<2x4x128xf32, #tpu.memory_space<vmem>>, vector<2x1x128xf32>,
    %74 = arith.mulf %39, %61 : vector<2x128xf32>
    %c0_34 = arith.constant 0 : index
    %c3_35 = arith.constant 3 : index
    %c0_36 = arith.constant 0 : index
    %75 = vector.load %arg3[%c0_34, %c3_35, %c0_36] : memref<2x4x128xf32, #tpu.memory_space<vmem>>, vector<2x1x128xf32>
    %76 = vector.shape_cast %75 : vector<2x1x128xf32> to vector<2x128xf32>
    %77 = vector.shape_cast %74 : vector<2x128xf32> to vector<2x1x128xf32>
    tpu.vector_store %arg3[%c0_34, %c3_35, %c0_36], %77 {strides = array<i32>} : memref<2x4x128xf32, #tpu.memory_space<vmem>>, vector<2x1x128xf32>,
    return
  }
  func.func @transform_0(%arg0: i32, %arg1: i32) -> (i32, i32, i32, i32) {
    %c0_i32 = arith.constant 0 : i32
    %c0_i32_0 = arith.constant 0 : i32
    %c0_i32_1 = arith.constant 0 : i32
    return %arg0, %c0_i32, %c0_i32_0, %arg1 : i32, i32, i32, i32
  }
  func.func @transform_1(%arg0: i32, %arg1: i32) -> (i32, i32, i32) {
    %c0_i32 = arith.constant 0 : i32
    %c0_i32_0 = arith.constant 0 : i32
    return %arg0, %c0_i32, %arg1 : i32, i32, i32
  }
}

</mosaic_0001>

<llo_original>
// kernel: tpu_custom_call.1
$region0: #{tpu_custom_call.1}
  #allocation0 [shape = 'u32[]', space=smem, size = 0x4, offset = 0x4, fixed_abs, tag = 'smem constant byte address 0x4 - core index']
  #allocation1 [shape = 'u32[144,128]{1,0:T(1,128)}', space=vmem, size = 0x12000, scoped, tag = 'internal scratch']
  %s0 = inlined_call_operand.hbm [shape: f32[2,4,8,256], index: 0, kind: input, shape index: {}]
  %s1 = inlined_call_operand.hbm [shape: f32[2,4,256], index: 1, kind: output, shape index: {}]
  %s2 = sld [smem:[#allocation0]]
  $region41: #{tpu_custom_call.1} parent=0
    _
  %s4 = ssub.s32 1, %s2
  %s5 = scalar_select 0, %s4, %s2
  $region1: #{tpu_custom_call.1} parent=0
    #allocation2 [shape = 'u8[65536]{0}', space=vmem, size = 0x10000, scoped, tag = 'input window, operand 0']
    #allocation3 [shape = 's32[2]{0}', space=sflag, size = 0x8, scoped, tag = 'scoped memory for tpu_custom_call.1']
    #allocation4 [shape = 's32[2]{0}', space=sflag, size = 0x8, scoped, tag = 'scoped memory for tpu_custom_call.1']
    #allocation5 [shape = 'u8[8192]{0}', space=vmem, size = 0x2000, scoped, tag = 'output window, operand 0']
    %6 = vsyncpa [#allocation3], 0
    %s7 = scalar_lea.sflag [#allocation3], 1
    %8 = vsyncpa %s7, 0
    %9 = vsyncpa [#allocation4], 0
    %s10 = scalar_lea.sflag [#allocation4], 1
    %11 = vsyncpa %s10, 0
    loop: start=0, step=1, limit=4
    $region2: #{tpu_custom_call.1} parent=1 // loop_pre_header
      _
    $region3: #{tpu_custom_call.1} parent=1 // loop_header
      %s13 = sphi 0, %s17
      %p14 = scmp.ge.s32.totalorder %s13, 4
      %s20 = sphi 0, %s32
      %s21 = sphi 0, %s28
      %s22 = sphi 0, %s20
      %s23 = sphi 0, %s21
      %s24 = sphi 0, %s22
      %s25 = sphi 0, %s23
      %s37 = sphi 0, %s39
      %s40 = sphi 0, %s37
      %s41 = sphi 0, %s40
      %s57 = sphi 0, %s41
      %s65 = sphi 0, %s67
      %s68 = sphi 0, %s65
      %s69 = sphi 0, %s68
      %s85 = sphi 0, %s69
    $region4: #{tpu_custom_call.1} parent=1 // loop_header_branch
      %16 = sbr.rel (%p14) target = $region8
    $region5: #{tpu_custom_call.1} parent=1 // loop_body
      %s18 = ssub.s32 %s13, 1
      %s19 = ssub.s32 %s13, 2
      %s26 = sadd.s32 1, %s21
      %p27 = scmp.ge.s32.totalorder %s26, 2
      %s28 = scalar_select %p27, 0, %s26
      %s29 = sadd.s32 1, %s20
      %s30 = scalar_select %p27, %s29, %s20
      %p31 = scmp.ge.s32.totalorder %s30, 1
      %s32 = scalar_select %p31, 0, %s30
      %s33 = ssub.s32 %s20, %s32
      %s34 = ssub.s32 %s21, %s28
      %s35 = sor.u32 %s33, %s34
      %p36 = scmp.eq.s32.totalorder %s35, 0
      %s38 = sadd.s32 %s37, 1
      %s39 = scalar_select %p36, %s37, %s38
      %p42 = pneg %p36
      %p43 = scmp.eq.s32.totalorder %s13, 1
      %p44 = por %p42, %p43
      %p45 = scmp.ne.s32.totalorder %s37, %s40
      %p46 = scmp.eq.s32.totalorder %s13, 0
      %p47 = por %p45, %p46
      %p48 = scmp.ne.s32.totalorder %s37, %s40
      %p49 = scmp.eq.s32.totalorder %s18, 1
      %p50 = por %p48, %p49
      %p51 = scmp.ne.s32.totalorder %s40, %s41
      %p52 = scmp.eq.s32.totalorder %s18, 0
      %p53 = por %p51, %p52
      %p54 = scmp.ne.s32.totalorder %s40, %s41
      %p55 = scmp.eq.s32.totalorder %s19, 1
      %p56 = por %p54, %p55
      %p58 = scmp.ne.s32.totalorder %s41, %s57
      %p59 = scmp.eq.s32.totalorder %s19, 0
      %p60 = por %p58, %p59
      %s61 = ssub.s32 %s20, %s32
      %s62 = ssub.s32 %s21, %s28
      %s63 = sor.u32 %s61, %s62
      %p64 = scmp.eq.s32.totalorder %s63, 0
      %s66 = sadd.s32 %s65, 1
      %s67 = scalar_select %p64, %s65, %s66
      %p70 = pneg %p64
      %p71 = scmp.eq.s32.totalorder %s13, 1
      %p72 = por %p70, %p71
      %p73 = scmp.ne.s32.totalorder %s65, %s68
      %p74 = scmp.eq.s32.totalorder %s13, 0
      %p75 = por %p73, %p74
      %p76 = scmp.ne.s32.totalorder %s65, %s68
      %p77 = scmp.eq.s32.totalorder %s18, 1
      %p78 = por %p76, %p77
      %p79 = scmp.ne.s32.totalorder %s68, %s69
      %p80 = scmp.eq.s32.totalorder %s18, 0
      %p81 = por %p79, %p80
      %p82 = scmp.ne.s32.totalorder %s68, %s69
      %p83 = scmp.eq.s32.totalorder %s19, 1
      %p84 = por %p82, %p83
      %p86 = scmp.ne.s32.totalorder %s69, %s85
      %p87 = scmp.eq.s32.totalorder %s19, 0
      %p88 = por %p86, %p87
      %p89 = scmp.le.s32.totalorder 1, %s13
      %p90 = scmp.lt.s32.totalorder %s13, 3
      %p91 = pnand %p89, %p90
      %p92 = pneg %p91
      // Predicated region
      $region9: #{tpu_custom_call.1} parent=5 // pred_check
        _
      $region10: #{tpu_custom_call.1} parent=5 // pred_check_branch
        %94 = sbr.rel (%p91) target = $region12
      $region11: #{tpu_custom_call.1} parent=5 // pred_region
        %s95 = ssub.s32 %s13, 1
      $region12: #{tpu_custom_call.1} parent=5 // pred_fallthru
        _
      %p96 = scmp.lt.s32.totalorder %s13, 2
      // Predicated region
      $region13: #{tpu_custom_call.1} parent=5 // pred_check
        %p97 = pneg %p96
      $region14: #{tpu_custom_call.1} parent=5 // pred_check_branch
        %99 = sbr.rel (%p97) target = $region16
      $region15: #{tpu_custom_call.1} parent=5 // pred_region
        // Predicated region
        $region17: #{tpu_custom_call.1} parent=15 // pred_check
          %p100 = pneg %p47
        $region18: #{tpu_custom_call.1} parent=15 // pred_check_branch
          %102 = sbr.rel (%p100) target = $region20
        $region19: #{tpu_custom_call.1} parent=15 // pred_region
          %s103 = sand.u32 %s37, 1
          %s104 = scalar_lea.sflag [#allocation3], %s103
          %s105 = sand.u32 %s37, 1
          %s106 = smul.addr %s105, 64
          %s107 = scalar_lea.vmem [#allocation2], %s106
          %s108 = smul.u32 2, %s20
          %s110 = ssub.s32 1024, 1024
          %111 = vsyncadd %s104, %s110
          %s112 = smul.addr %s108, 8
          %s113 = sadd.s32 %s21, %s112
          %s114 = smul.addr %s113, 128
          %s115 = scalar_lea.hbm %s0, %s114
          %s116 = sshll.u32 %s107, 4
          %s117 = int_to_ptr.vmem [resolvable:$true] %s116
          %122 = dma.hbm_to_vmem [thread:$0]  %s115, 1024, %s117, %s104, 256, 128, 8
        $region20: #{tpu_custom_call.1} parent=15 // pred_fallthru
          _
      $region16: #{tpu_custom_call.1} parent=5 // pred_fallthru
        _
      %p123 = scmp.le.s32.totalorder 1, %s13
      %p124 = scmp.lt.s32.totalorder %s13, 3
      %p125 = pnand %p123, %p124
      %p126 = pneg %p125
      // Predicated region
      $region21: #{tpu_custom_call.1} parent=5 // pred_check
        _
      $region22: #{tpu_custom_call.1} parent=5 // pred_check_branch
        %128 = sbr.rel (%p125) target = $region24
      $region23: #{tpu_custom_call.1} parent=5 // pred_region
        %s129 = ssub.s32 %s13, 1
        %s130 = sand.u32 %s40, 1
        %s131 = scalar_lea.sflag [#allocation3], %s130
        %s132 = sand.u32 %s40, 1
        %s133 = smul.addr %s132, 64
        %s134 = scalar_lea.vmem [#allocation2], %s133
        // Predicated region
        $region25: #{tpu_custom_call.1} parent=23 // pred_check
          %p135 = pneg %p53
        $region26: #{tpu_custom_call.1} parent=23 // pred_check_branch
          %137 = sbr.rel (%p135) target = $region28
        $region27: #{tpu_custom_call.1} parent=23 // pred_region
          %138 = dma.done %s131, 1024
        $region28: #{tpu_custom_call.1} parent=23 // pred_fallthru
          _
        %s139 = sand.u32 %s40, 1
        %s140 = scalar_lea.sflag [#allocation3], %s139
        %s141 = sand.u32 %s40, 1
        %s142 = smul.addr %s141, 64
        %s143 = scalar_lea.vmem [#allocation2], %s142
        %p144 = pneg %p53
        %p145 = pneg %p50
        %p146 = pneg %p81
        %p147 = pneg %p78
        %s148 = sand.u32 %s68, 1
        %s149 = scalar_lea.sflag [#allocation4], %s148
        %s150 = sand.u32 %s68, 1
        %s151 = smul.addr %s150, 8
        %s152 = scalar_lea.vmem [#allocation5], %s151
        %s153 = smul.u32 2, %s22
        %s154 = smul.u32 2, %s22
        %s155 = scalar_lea.vmem %s134, 24 [#allocation2]
        %v156 = vld [vmem:[%s155] sm:$0xff]
        %v157 = vld [vmem:[%s155 + $0x20] sm:$0xff]
        %v158 = vmax.f32 %v156, 0.0
        %v159 = vmax.f32 %v157, 0.0
        %v160 = vadd.f32 %v158, 1e-10
        %v161 = vadd.f32 %v159, 1e-10
        %v162 = vlog2.pop %v160
        %v163 = vmul.f32 %v162, 0.6931472
        %v164 = vlog2.pop %v161
        %v165 = vmul.f32 %v164, 0.6931472
        %v166 = vrot.slane %v163, 4
        %v167 = vadd.f32 %v163, %v166
        %v168 = vrot.slane %v167, 2
        %v169 = vadd.f32 %v167, %v168
        %v170 = vrot.slane %v169, 1
        %v171 = vadd.f32 %v169, %v170
        %v172 = vrot.slane %v165, 4
        %v173 = vadd.f32 %v165, %v172
        %v174 = vrot.slane %v173, 2
        %v175 = vadd.f32 %v173, %v174
        %v176 = vrot.slane %v175, 1
        %v177 = vadd.f32 %v175, %v176
        %v178 = vld [vmem:[%s134] sm:$0xff]
        %v179 = vld [vmem:[%s134 + $0x20] sm:$0xff]
        %v180 = vadd.f32 %v178, %v156
        %v181 = vadd.f32 %v179, %v157
        %v182 = vmax.f32 %v180, 0.0
        %v183 = vmax.f32 %v181, 0.0
        %v184 = vadd.f32 %v182, 1e-10
        %v185 = vadd.f32 %v183, 1e-10
        %v186 = vlog2.pop %v184
        %v187 = vmul.f32 %v186, 0.6931472
        %v188 = vlog2.pop %v185
        %v189 = vmul.f32 %v188, 0.6931472
        %v190 = vrot.slane %v187, 4
        %v191 = vadd.f32 %v187, %v190
        %v192 = vrot.slane %v191, 2
        %v193 = vadd.f32 %v191, %v192
        %v194 = vrot.slane %v193, 1
        %v195 = vadd.f32 %v193, %v194
        %v196 = vrot.slane %v189, 4
        %v197 = vadd.f32 %v189, %v196
        %v198 = vrot.slane %v197, 2
        %v199 = vadd.f32 %v197, %v198
        %v200 = vrot.slane %v199, 1
        %v201 = vadd.f32 %v199, %v200
        %s202 = scalar_lea.vmem %s134, 8 [#allocation2]
        %v203 = vld [vmem:[%s202] sm:$0xff]
        %v204 = vld [vmem:[%s202 + $0x20] sm:$0xff]
        %v205 = vadd.f32 %v203, %v156
        %v206 = vadd.f32 %v204, %v157
        %v207 = vmax.f32 %v205, 0.0
        %v208 = vmax.f32 %v206, 0.0
        %v209 = vadd.f32 %v207, 1e-10
        %v210 = vadd.f32 %v208, 1e-10
        %v211 = vlog2.pop %v209
        %v212 = vmul.f32 %v211, 0.6931472
        %v213 = vlog2.pop %v210
        %v214 = vmul.f32 %v213, 0.6931472
        %v215 = vrot.slane %v212, 4
        %v216 = vadd.f32 %v212, %v215
        %v217 = vrot.slane %v216, 2
        %v218 = vadd.f32 %v216, %v217
        %v219 = vrot.slane %v218, 1
        %v220 = vadd.f32 %v218, %v219
        %v221 = vrot.slane %v214, 4
        %v222 = vadd.f32 %v214, %v221
        %v223 = vrot.slane %v222, 2
        %v224 = vadd.f32 %v222, %v223
        %v225 = vrot.slane %v224, 1
        %v226 = vadd.f32 %v224, %v225
        %s227 = scalar_lea.vmem %s134, 16 [#allocation2]
        %v228 = vld [vmem:[%s227] sm:$0xff]
        %v229 = vld [vmem:[%s227 + $0x20] sm:$0xff]
        %v230 = vadd.f32 %v228, %v156
        %v231 = vadd.f32 %v229, %v157
        %v232 = vmax.f32 %v230, 0.0
        %v233 = vmax.f32 %v231, 0.0
        %v234 = vadd.f32 %v232, 1e-10
        %v235 = vadd.f32 %v233, 1e-10
        %v236 = vlog2.pop %v234
        %v237 = vmul.f32 %v236, 0.6931472
        %v238 = vlog2.pop %v235
        %v239 = vmul.f32 %v238, 0.6931472
        %v240 = vrot.slane %v237, 4
        %v241 = vadd.f32 %v237, %v240
        %v242 = vrot.slane %v241, 2
        %v243 = vadd.f32 %v241, %v242
        %v244 = vrot.slane %v243, 1
        %v245 = vadd.f32 %v243, %v244
        %v246 = vrot.slane %v239, 4
        %v247 = vadd.f32 %v239, %v246
        %v248 = vrot.slane %v247, 2
        %v249 = vadd.f32 %v247, %v248
        %v250 = vrot.slane %v249, 1
        %v251 = vadd.f32 %v249, %v250
        %v252 = vmax.f32 %v171, %v195
        %v253 = vmax.f32 %v177, %v201
        %v254 = vmax.f32 %v252, %v220
        %v255 = vmax.f32 %v253, %v226
        %v256 = vmax.f32 %v254, %v245
        %v257 = vmax.f32 %v255, %v251
        %v258 = vsub.f32 %v171, %v256
        %v259 = vsub.f32 %v177, %v257
        %v260 = vmul.f32 %v258, 1.442695
        %v261 = vpow.pop %v260
        %v262 = vmul.f32 %v259, 1.442695
        %v263 = vpow.pop %v262
        %v264 = vsub.f32 %v195, %v256
        %v265 = vsub.f32 %v201, %v257
        %v266 = vmul.f32 %v264, 1.442695
        %v267 = vpow.pop %v266
        %v268 = vmul.f32 %v265, 1.442695
        %v269 = vpow.pop %v268
        %v270 = vsub.f32 %v267, %v261
        %v271 = vsub.f32 %v269, %v263
        %v272 = vsub.f32 %v220, %v256
        %v273 = vsub.f32 %v226, %v257
        %v274 = vmul.f32 %v272, 1.442695
        %v275 = vpow.pop %v274
        %v276 = vmul.f32 %v273, 1.442695
        %v277 = vpow.pop %v276
        %v278 = vsub.f32 %v275, %v261
        %v279 = vsub.f32 %v277, %v263
        %v280 = vsub.f32 %v245, %v256
        %v281 = vsub.f32 %v251, %v257
        %v282 = vmul.f32 %v280, 1.442695
        %v283 = vpow.pop %v282
        %v284 = vmul.f32 %v281, 1.442695
        %v285 = vpow.pop %v284
        %v286 = vsub.f32 %v283, %v261
        %v287 = vsub.f32 %v285, %v263
        %v288 = vand.u32 2147483647, %v270
        %v289 = vand.u32 2147483647, %v271
        %v290 = vadd.f32 %v261, %v288
        %v291 = vadd.f32 %v263, %v289
        %v292 = vand.u32 2147483647, %v278
        %v293 = vand.u32 2147483647, %v279
        %v294 = vadd.f32 %v290, %v292
        %v295 = vadd.f32 %v291, %v293
        %v296 = vand.u32 2147483647, %v286
        %v297 = vand.u32 2147483647, %v287
        %v298 = vadd.f32 %v294, %v296
        %v299 = vadd.f32 %v295, %v297
        %v300 = vmax.f32 %v298, 1e-12
        %v301 = vmax.f32 %v299, 1e-12
        %v302 = vrcp.pop %v300
        %v303 = vrcp.pop %v301
        %v304 = vmul.f32 %v300, %v302
        %v305 = vmul.f32 %v301, %v303
        %v306 = vsub.f32 2.0, %v304
        %v307 = vsub.f32 2.0, %v305
        %v308 = vmul.f32 %v302, %v306
        %v309 = vmul.f32 %v303, %v307
        %v310 = vmul.f32 %v270, %v308
        %v311 = vmul.f32 %v271, %v309
        %312 = vst [vmem:[%s152] sm:$0x1] %v310
        %313 = vst [vmem:[%s152 + $0x4] sm:$0x1] %v311
        %v314 = vmul.f32 %v278, %v308
        %v315 = vmul.f32 %v279, %v309
        %316 = vst [vmem:[%s152 + $0x1] sm:$0x1] %v314
        %317 = vst [vmem:[%s152 + $0x5] sm:$0x1] %v315
        %v318 = vmul.f32 %v286, %v308
        %v319 = vmul.f32 %v287, %v309
        %320 = vst [vmem:[%s152 + $0x2] sm:$0x1] %v318
        %321 = vst [vmem:[%s152 + $0x6] sm:$0x1] %v319
        %v322 = vmul.f32 %v261, %v308
        %v323 = vmul.f32 %v263, %v309
        %324 = vst [vmem:[%s152 + $0x3] sm:$0x1] %v322
        %325 = vst [vmem:[%s152 + $0x7] sm:$0x1] %v323
        %s326 = sand.u32 %s68, 1
        %s327 = scalar_lea.sflag [#allocation4], %s326
        %s328 = sand.u32 %s68, 1
        %s329 = smul.addr %s328, 8
        %s330 = scalar_lea.vmem [#allocation5], %s329
        // Predicated region
        $region29: #{tpu_custom_call.1} parent=23 // pred_check
          %p331 = pneg %p78
        $region30: #{tpu_custom_call.1} parent=23 // pred_check_branch
          %333 = sbr.rel (%p331) target = $region32
        $region31: #{tpu_custom_call.1} parent=23 // pred_region
          %s334 = smul.u32 2, %s22
          %s336 = ssub.s32 128, 128
          %337 = vsyncadd %s327, %s336
          %s338 = smul.addr %s334, 2
          %s339 = sadd.s32 %s23, %s338
          %s340 = smul.addr %s339, 64
          %s341 = scalar_lea.hbm %s1, %s340
          %s342 = sshll.u32 %s330, 4
          %s343 = int_to_ptr.vmem [resolvable:$true] %s342
          %348 = dma.vmem_to_hbm [thread:$0]  %s343, 128, %s341, %s327, 64, 128, 4
        $region32: #{tpu_custom_call.1} parent=23 // pred_fallthru
          _
      $region24: #{tpu_custom_call.1} parent=5 // pred_fallthru
        _
      %p349 = scmp.le.s32.totalorder 2, %s13
      // Predicated region
      $region33: #{tpu_custom_call.1} parent=5 // pred_check
        %p350 = pneg %p349
      $region34: #{tpu_custom_call.1} parent=5 // pred_check_branch
        %352 = sbr.rel (%p350) target = $region36
      $region35: #{tpu_custom_call.1} parent=5 // pred_region
        %s353 = ssub.s32 %s13, 2
        // Predicated region
        $region37: #{tpu_custom_call.1} parent=35 // pred_check
          %p354 = pneg %p84
        $region38: #{tpu_custom_call.1} parent=35 // pred_check_branch
          %356 = sbr.rel (%p354) target = $region40
        $region39: #{tpu_custom_call.1} parent=35 // pred_region
          %s357 = sand.u32 %s69, 1
          %s358 = scalar_lea.sflag [#allocation4], %s357
          %s359 = sand.u32 %s69, 1
          %s360 = smul.addr %s359, 8
          %s361 = scalar_lea.vmem [#allocation5], %s360
          %362 = dma.done %s358, 128
        $region40: #{tpu_custom_call.1} parent=35 // pred_fallthru
          _
      $region36: #{tpu_custom_call.1} parent=5 // pred_fallthru
        _
    $region6: #{tpu_custom_call.1} parent=1 // loop_footer
      %s17 = sadd.s32 1, %s13
    $region7: #{tpu_custom_call.1} parent=1 // loop_footer_branch
      %12 = sbr.rel target = $region3
    $region8: #{tpu_custom_call.1} parent=1 // loop_exit
      _
    %363 = vsyncpa [#allocation3], 1
    %s364 = scalar_lea.sflag [#allocation3], 1
    %365 = vsyncpa %s364, 1
    %366 = vsyncpa [#allocation4], 1
    %s367 = scalar_lea.sflag [#allocation4], 1
    %368 = vsyncpa %s367, 1

</llo_original>
